<compile_context>
chip_gen: v5e
topology: v5e:2x2
jax: 0.10.0
libtpu: 0.0.40
codegen_flags: <defaults>
</compile_context>

<pallas_src>
import jax
import jax.numpy as jnp
from jax.experimental import pallas as pl
from jax.experimental.pallas import tpu as pltpu

LANES = 128
SUBLANES = 8


def _chip_params():
    """Best-effort chip query: (vmem_capacity_bytes, two_tensorcores_per_chip)."""
    vmem_bytes = 128 << 20            # v5e / v6e default
    two_tc = False
    try:
        info = pltpu.get_tpu_info()
        vmem_bytes = int(getattr(info, "vmem_capacity_bytes", vmem_bytes))
    except Exception:
        pass
    try:
        kind = jax.devices()[0].device_kind.lower()
        if "v7" in kind:              # v7x: 2 TCs per chip, 64 MiB VMEM per TC
            two_tc = True
            vmem_bytes = min(vmem_bytes, 64 << 20)
    except Exception:
        pass
    return vmem_bytes, two_tc


def _make_mse_kernel(rows, tile_rows, steps_per_part, needs_mask):
    """rows / tile_rows / steps_per_part / needs_mask are static Python values."""
    full_vreg = (tile_rows % SUBLANES == 0)

    def kernel(x_ref, y_ref, o_ref):
        s = pl.program_id(1)

        @pl.when(s == 0)
        def _init():
            o_ref[...] = jnp.zeros_like(o_ref)

        # Widen to f32 on the VPU (inputs stream in their native dtype).
        d = x_ref[...].astype(jnp.float32) - y_ref[...].astype(jnp.float32)
        sq = d * d

        def accum(v):
            if full_vreg:
                # Pure-VPU accumulation into the full (8,128) output vreg;
                # the cross-sublane/lane reduce is deferred to the wrapper.
                o_ref[...] += v.reshape(tile_rows // SUBLANES, SUBLANES, LANES).sum(axis=0)
            else:
                # Tiny single-block fallback (tile_rows == rows, not /8).
                o_ref[0:1, :] += jnp.sum(v, axis=0, keepdims=True)

        if not needs_mask:
            accum(sq)
        else:
            logical_block = pl.program_id(0) * steps_per_part + s
            remaining = rows - logical_block * tile_rows      # rows left in/after this block
            is_full = remaining >= tile_rows

            # Steady-state (hot) path: no mask work at all.
            @pl.when(is_full)
            def _hot():
                accum(sq)

            # Boundary / clamped-duplicate block (cold): mask rows past the
            # true row count (remaining <= 0 zeroes the whole block).
            @pl.when(jnp.logical_not(is_full))
            def _cold():
                row_in_tile = jax.lax.broadcasted_iota(jnp.int32, sq.shape, 0)
                accum(jnp.where(row_in_tile < remaining, sq, 0.0))

    return kernel


def mse_loss_pallas(outputs, labels, *, tile_rows=None):
    """Mean squared error over all elements, computed with a Pallas TPU kernel."""
    assert outputs.shape == labels.shape, "mse_loss requires matching shapes here"
    n_elems = outputs.size

    x = outputs.reshape(-1)
    y = labels.reshape(-1)

    rows = n_elems // LANES
    tail = n_elems - rows * LANES

    # Ragged tail (<=127 elements): tiny plain-jnp sum in the wrapper; the
    # kernel only sees the 128-aligned prefix.  No full-tensor jnp.pad copy.
    tail_sq_sum = jnp.float32(0.0)
    if tail:
        xt = x[rows * LANES:].astype(jnp.float32)
        yt = y[rows * LANES:].astype(jnp.float32)
        tail_sq_sum = jnp.sum((xt - yt) ** 2)
        x = x[: rows * LANES]
        y = y[: rows * LANES]

    if rows == 0:
        return tail_sq_sum / jnp.float32(n_elems)

    x = x.reshape(rows, LANES)
    y = y.reshape(rows, LANES)

    vmem_bytes, two_tc = _chip_params()
    small_vmem = vmem_bytes <= (64 << 20)

    # Generation-aware tile: per-input per-buffer block budget.
    if tile_rows is None:
        block_budget = (4 << 20) if small_vmem else (8 << 20)
        itemsize = max(x.dtype.itemsize, y.dtype.itemsize)
        tile_rows = block_budget // (LANES * itemsize)
    tile_rows = max(32, (int(tile_rows) // 32) * 32)
    if tile_rows >= rows:
        tile_rows = rows                         # single full-extent block

    total_steps = -(-rows // tile_rows)

    # 2-way TensorCore split only on v7x; v5e/v6e have a single TC per chip.
    nsplit = 1
    if two_tc and total_steps >= 2:
        nsplit = 2
        if total_steps % 2:
            # Rebalance tile so both TCs get equal full blocks (no wasted
            # duplicate tail DMA); fall back to clamp+mask if not possible.
            cand = max(32, ((-(-rows // (total_steps + 1))) + 31) // 32 * 32)
            cand_steps = -(-rows // cand)
            if cand_steps % 2 == 0:
                tile_rows, total_steps = cand, cand_steps

    steps_per_part = -(-total_steps // nsplit)
    needs_mask = (nsplit * steps_per_part * tile_rows) != rows

    def in_index_map(p, s):
        # Clamp so tail parts never issue a fully out-of-bounds DMA; their
        # contribution is zeroed by the in-kernel (pl.when-gated) mask.
        return (jnp.minimum(p * steps_per_part + s, total_steps - 1), 0)

    in_block_bytes = tile_rows * LANES * (x.dtype.itemsize + y.dtype.itemsize)
    f32_block_bytes = tile_rows * LANES * 4
    # 2 pipeline buffers per input + headroom for f32-widened temporaries.
    vmem_limit = 2 * in_block_bytes + 2 * f32_block_bytes + (2 << 20)
    vmem_cap = (48 << 20) if small_vmem else (100 << 20)
    vmem_limit = int(min(max(vmem_limit, 16 << 20), vmem_cap))

    cost = pl.CostEstimate(
        flops=2 * n_elems,
        transcendentals=0,
        bytes_accessed=n_elems * (x.dtype.itemsize + y.dtype.itemsize)
        + nsplit * SUBLANES * LANES * 4,
    )

    partials = pl.pallas_call(
        _make_mse_kernel(rows, tile_rows, steps_per_part, needs_mask),
        out_shape=jax.ShapeDtypeStruct((nsplit * SUBLANES, LANES), jnp.float32),
        grid_spec=pltpu.PrefetchScalarGridSpec(
            num_scalar_prefetch=0,
            grid=(nsplit, steps_per_part),
            in_specs=[
                pl.BlockSpec((tile_rows, LANES), in_index_map),
                pl.BlockSpec((tile_rows, LANES), in_index_map),
            ],
            out_specs=pl.BlockSpec((SUBLANES, LANES), lambda p, s: (p, 0)),
        ),
        compiler_params=pltpu.CompilerParams(
            dimension_semantics=("parallel", "arbitrary"),
            vmem_limit_bytes=vmem_limit,
        ),
        cost_estimate=cost,
    )(x, y)

    # Single tiny cross-sublane+lane reduce + mean over the TRUE element count.
    return (jnp.sum(partials) + tail_sq_sum) / jnp.float32(n_elems)


if __name__ == "__main__":
    key = jax.random.PRNGKey(0)
    k1, k2, k3, k4, k5, k6 = jax.random.split(key, 6)

    # Primary check: small NCHW shape, single-block path, f32.
    shape = (2, 4, 16, 16)
    outputs = jax.random.normal(k1, shape, dtype=jnp.float32)
    labels = jax.random.normal(k2, shape, dtype=jnp.float32)
    loss = mse_loss_pallas(outputs, labels)
    jax.block_until_ready(loss)
    ref = jnp.mean((outputs - labels) ** 2)
    assert jnp.allclose(loss, ref, rtol=1e-6, atol=1e-6), (loss, ref)

    # Secondary check: multi-block grid, ragged last block (pl.when-gated
    # mask), possible v7x core-split, native bf16 streaming.
    shape2 = (2, 4, 40, 64)
    o2 = jax.random.normal(k3, shape2, dtype=jnp.bfloat16)
    l2 = jax.random.normal(k4, shape2, dtype=jnp.bfloat16)
    loss2 = mse_loss_pallas(o2, l2, tile_rows=64)
    jax.block_until_ready(loss2)
    ref2 = jnp.mean((o2.astype(jnp.float32) - l2.astype(jnp.float32)) ** 2)
    assert jnp.allclose(loss2, ref2, rtol=1e-5, atol=1e-6), (loss2, ref2)

    # Third check: element count not a multiple of 128 -> aligned prefix in
    # the kernel + wrapper-side tail sum (no jnp.pad copy).
    shape3 = (3, 5, 7, 11)  # 1155 elements = 9*128 + 3
    o3 = jax.random.normal(k5, shape3, dtype=jnp.float32)
    l3 = jax.random.normal(k6, shape3, dtype=jnp.float32)
    loss3 = mse_loss_pallas(o3, l3)
    jax.block_until_ready(loss3)
    ref3 = jnp.mean((o3 - l3) ** 2)
    assert jnp.allclose(loss3, ref3, rtol=1e-6, atol=1e-6), (loss3, ref3)

    print("KERNEL_OK")
</pallas_src>

<mosaic_0001>
module attributes {stable_mosaic.version = 11 : i64} {
  func.func @kernel(%arg0: i32, %arg1: i32, %arg2: memref<16x128xf32, #tpu.memory_space<vmem>>, %arg3: memref<16x128xf32, #tpu.memory_space<vmem>>, %arg4: memref<8x128xf32, #tpu.memory_space<vmem>>) attributes {dimension_semantics = [#tpu.dimension_semantics<parallel>, #tpu.dimension_semantics<arbitrary>], iteration_bounds = array<i64: 1, 1>, scalar_prefetch = 0 : i64, scratch_operands = 0 : i64, tpu.core_type = #tpu.core_type<tc>, window_params = [{transform_indices = @transform_0, window_bounds = array<i64: 16, 128>}, {transform_indices = @transform_1, window_bounds = array<i64: 16, 128>}, {transform_indices = @transform_2, window_bounds = array<i64: 8, 128>}]} {
    %c0_i32 = arith.constant 0 : i32
    %0 = arith.cmpi eq, %arg1, %c0_i32 : i32
    %1 = arith.extui %0 : i1 to i32
    %c0_i32_0 = arith.constant 0 : i32
    %2 = arith.cmpi ne, %1, %c0_i32_0 : i32
    scf.if %2 {
      %cst_8 = arith.constant 0.000000e+00 : f32
      %12 = vector.broadcast %cst_8 : f32 to vector<8x128xf32>
      %c0_9 = arith.constant 0 : index
      %c0_10 = arith.constant 0 : index
      %13 = vector.load %arg4[%c0_9, %c0_10] : memref<8x128xf32, #tpu.memory_space<vmem>>, vector<8x128xf32>
      tpu.vector_store %arg4[%c0_9, %c0_10], %12 {strides = array<i32>} : memref<8x128xf32, #tpu.memory_space<vmem>>, vector<8x128xf32>,
    } else {
    }
    %c0 = arith.constant 0 : index
    %c0_1 = arith.constant 0 : index
    %3 = vector.load %arg2[%c0, %c0_1] : memref<16x128xf32, #tpu.memory_space<vmem>>, vector<16x128xf32>
    %c0_2 = arith.constant 0 : index
    %c0_3 = arith.constant 0 : index
    %4 = vector.load %arg3[%c0_2, %c0_3] : memref<16x128xf32, #tpu.memory_space<vmem>>, vector<16x128xf32>
    %5 = arith.subf %3, %4 : vector<16x128xf32>
    %6 = arith.mulf %5, %5 : vector<16x128xf32>
    %c0_4 = arith.constant 0 : index
    %c0_5 = arith.constant 0 : index
    %7 = vector.load %arg4[%c0_4, %c0_5] : memref<8x128xf32, #tpu.memory_space<vmem>>, vector<8x128xf32>
    %8 = vector.shape_cast %6 : vector<16x128xf32> to vector<2x8x128xf32>
    %cst = arith.constant dense<0.000000e+00> : vector<8x128xf32>
    %9 = vector.multi_reduction <add>, %8, %cst [0] : vector<2x8x128xf32> to vector<8x128xf32>
    %10 = arith.addf %7, %9 : vector<8x128xf32>
    %c0_6 = arith.constant 0 : index
    %c0_7 = arith.constant 0 : index
    %11 = vector.load %arg4[%c0_6, %c0_7] : memref<8x128xf32, #tpu.memory_space<vmem>>, vector<8x128xf32>
    tpu.vector_store %arg4[%c0_6, %c0_7], %10 {strides = array<i32>} : memref<8x128xf32, #tpu.memory_space<vmem>>, vector<8x128xf32>,
    return
  }
  func.func @transform_0(%arg0: i32, %arg1: i32) -> (i32, i32) {
    %c1_i32 = arith.constant 1 : i32
    %0 = arith.muli %arg0, %c1_i32 : i32
    %1 = arith.addi %0, %arg1 : i32
    %c0_i32 = arith.constant 0 : i32
    %2 = arith.minsi %1, %c0_i32 : i32
    %c0_i32_0 = arith.constant 0 : i32
    %c0_i32_1 = arith.constant 0 : i32
    return %2, %c0_i32_0 : i32, i32
  }
  func.func @transform_1(%arg0: i32, %arg1: i32) -> (i32, i32) {
    %c1_i32 = arith.constant 1 : i32
    %0 = arith.muli %arg0, %c1_i32 : i32
    %1 = arith.addi %0, %arg1 : i32
    %c0_i32 = arith.constant 0 : i32
    %2 = arith.minsi %1, %c0_i32 : i32
    %c0_i32_0 = arith.constant 0 : i32
    %c0_i32_1 = arith.constant 0 : i32
    return %2, %c0_i32_0 : i32, i32
  }
  func.func @transform_2(%arg0: i32, %arg1: i32) -> (i32, i32) {
    %c0_i32 = arith.constant 0 : i32
    %c0_i32_0 = arith.constant 0 : i32
    return %arg0, %c0_i32 : i32, i32
  }
}

</mosaic_0001>

<llo_original>
// kernel: tpu_custom_call.1
$region0: #{tpu_custom_call.1}
  #allocation0 [shape = 'u32[]', space=smem, size = 0x4, offset = 0x4, fixed_abs, tag = 'smem constant byte address 0x4 - core index']
  #allocation1 [shape = 'u32[72,128]{1,0:T(1,128)}', space=vmem, size = 0x9000, scoped, tag = 'internal scratch']
  %s0 = inlined_call_operand.hbm [shape: f32[16,128], index: 0, kind: input, shape index: {}]
  %s1 = inlined_call_operand.hbm [shape: f32[16,128], index: 1, kind: input, shape index: {}]
  %s2 = inlined_call_operand.hbm [shape: f32[8,128], index: 2, kind: output, shape index: {}]
  %s3 = sld [smem:[#allocation0]]
  $region30: #{tpu_custom_call.1} parent=0
    _
  %s5 = ssub.s32 1, %s3
  %s6 = scalar_select 0, %s5, %s3
  $region1: #{tpu_custom_call.1} parent=0
    #allocation2 [shape = 'u8[8192]{0}', space=vmem, size = 0x2000, scoped, tag = 'input window, operand 0, single buffered']
    #allocation3 [shape = 's32[1]{0}', space=sflag, size = 0x4, scoped, tag = 'scoped memory for tpu_custom_call.1']
    #allocation4 [shape = 's32[1]{0}', space=sflag, size = 0x4, scoped, tag = 'scoped memory for tpu_custom_call.1']
    #allocation5 [shape = 'u8[8192]{0}', space=vmem, size = 0x2000, scoped, tag = 'input window, operand 1, single buffered']
    #allocation6 [shape = 's32[1]{0}', space=sflag, size = 0x4, scoped, tag = 'scoped memory for tpu_custom_call.1']
    #allocation7 [shape = 'u8[4096]{0}', space=vmem, size = 0x1000, scoped, tag = 'output window, operand 0, single buffered']
    %7 = vsyncpa [#allocation3], 0
    %8 = vsyncpa [#allocation6], 0
    %9 = vsyncpa [#allocation4], 0
    // Predicated region
    $region2: #{tpu_custom_call.1} parent=1 // pred_check
      _
    $region3: #{tpu_custom_call.1} parent=1 // pred_check_branch
      %11 = sbr.rel (0) target = $region5
    $region4: #{tpu_custom_call.1} parent=1 // pred_region
      %s12 = sadd.s32 0, 0
      %p13 = scmp.lt.s32.totalorder %s12, 0
      %s14 = scalar_select %p13, %s12, 0
      %s15 = smul.u32 2, %s14
      %17 = vsyncadd [#allocation3], 0
      %s18 = smul.addr %s15, 8
      %s19 = scalar_lea.hbm %s0, %s18
      %s20 = sshll.u32 %s19, 4
      %s21 = int_to_ptr.hbm [resolvable:$true] %s20
      %s22 = sshll.u32 [#allocation2], 4
      %s23 = int_to_ptr.vmem [resolvable:$true] %s22
      %28 = dma.hbm_to_vmem [thread:$0]  %s21, 256, %s23, [#allocation3], 128, 128, 8
    $region5: #{tpu_custom_call.1} parent=1 // pred_fallthru
      _
    // Predicated region
    $region6: #{tpu_custom_call.1} parent=1 // pred_check
      _
    $region7: #{tpu_custom_call.1} parent=1 // pred_check_branch
      %30 = sbr.rel (0) target = $region9
    $region8: #{tpu_custom_call.1} parent=1 // pred_region
      %s31 = sadd.s32 0, 0
      %p32 = scmp.lt.s32.totalorder %s31, 0
      %s33 = scalar_select %p32, %s31, 0
      %s34 = smul.u32 2, %s33
      %36 = vsyncadd [#allocation6], 0
      %s37 = smul.addr %s34, 8
      %s38 = scalar_lea.hbm %s1, %s37
      %s39 = sshll.u32 %s38, 4
      %s40 = int_to_ptr.hbm [resolvable:$true] %s39
      %s41 = sshll.u32 [#allocation5], 4
      %s42 = int_to_ptr.vmem [resolvable:$true] %s41
      %47 = dma.hbm_to_vmem [thread:$0]  %s40, 256, %s42, [#allocation6], 128, 128, 8
    $region9: #{tpu_custom_call.1} parent=1 // pred_fallthru
      _
    // Predicated region
    $region10: #{tpu_custom_call.1} parent=1 // pred_check
      _
    $region11: #{tpu_custom_call.1} parent=1 // pred_check_branch
      %49 = sbr.rel (0) target = $region13
    $region12: #{tpu_custom_call.1} parent=1 // pred_region
      %51 = dma.done [#allocation3], 256
    $region13: #{tpu_custom_call.1} parent=1 // pred_fallthru
      _
    // Predicated region
    $region14: #{tpu_custom_call.1} parent=1 // pred_check
      _
    $region15: #{tpu_custom_call.1} parent=1 // pred_check_branch
      %53 = sbr.rel (0) target = $region17
    $region16: #{tpu_custom_call.1} parent=1 // pred_region
      %55 = dma.done [#allocation6], 256
    $region17: #{tpu_custom_call.1} parent=1 // pred_fallthru
      _
    %s56 = sadd.s32 0, 0
    %p57 = scmp.lt.s32.totalorder %s56, 0
    %s58 = scalar_select %p57, %s56, 0
    %s59 = smul.u32 2, %s58
    %s60 = sadd.s32 0, 0
    %p61 = scmp.lt.s32.totalorder %s60, 0
    %s62 = scalar_select %p61, %s60, 0
    %s63 = smul.u32 2, %s62
    %p64 = scmp.eq.s32.totalorder 0, 0
    // Predicated region
    $region18: #{tpu_custom_call.1} parent=1 // pred_check
      %p65 = pneg %p64
    $region19: #{tpu_custom_call.1} parent=1 // pred_check_branch
      %67 = sbr.rel (%p65) target = $region21
    $region20: #{tpu_custom_call.1} parent=1 // pred_region
      %68 = vst [vmem:[#allocation7] sm:$0xff] 0.0
    $region21: #{tpu_custom_call.1} parent=1 // pred_fallthru
      _
    %v69 = vld [vmem:[#allocation2] sm:$0xff]
    %v70 = vld [vmem:[#allocation2 + $0x8] sm:$0xff]
    %v71 = vld [vmem:[#allocation5] sm:$0xff]
    %v72 = vld [vmem:[#allocation5 + $0x8] sm:$0xff]
    %v73 = vsub.f32 %v69, %v71
    %v74 = vsub.f32 %v70, %v72
    %v75 = vmul.f32 %v73, %v73
    %v76 = vmul.f32 %v74, %v74
    %v77 = vld [vmem:[#allocation7] sm:$0xff]
    %v78 = vadd.f32 %v75, %v76
    %v79 = vadd.f32 %v77, %v78
    %80 = vst [vmem:[#allocation7] sm:$0xff] %v79
    // Predicated region
    $region22: #{tpu_custom_call.1} parent=1 // pred_check
      _
    $region23: #{tpu_custom_call.1} parent=1 // pred_check_branch
      %82 = sbr.rel (0) target = $region25
    $region24: #{tpu_custom_call.1} parent=1 // pred_region
      %84 = vsyncadd [#allocation4], 0
      %s86 = sshll.u32 [#allocation7], 4
      %s87 = int_to_ptr.vmem [resolvable:$true] %s86
      %s88 = sshll.u32 %s2, 4
      %s89 = int_to_ptr.hbm [resolvable:$true] %s88
      %91 = dma.vmem_to_hbm [thread:$0]  %s87, 128, %s89, [#allocation4]
    $region25: #{tpu_custom_call.1} parent=1 // pred_fallthru
      _
    // Predicated region
    $region26: #{tpu_custom_call.1} parent=1 // pred_check
      _
    $region27: #{tpu_custom_call.1} parent=1 // pred_check_branch
      %93 = sbr.rel (0) target = $region29
    $region28: #{tpu_custom_call.1} parent=1 // pred_region
      %95 = dma.done [#allocation4], 128
    $region29: #{tpu_custom_call.1} parent=1 // pred_fallthru
      _
    %96 = vsyncpa [#allocation3], 1
    %97 = vsyncpa [#allocation6], 1
    %98 = vsyncpa [#allocation4], 1

</llo_original>
